<compile_context>
chip_gen: v6e
topology: v6e:2x2x1
jax: 0.10.0
libtpu: 0.0.40
codegen_flags: <defaults>
</compile_context>

<pallas_src>
import functools
import math

import jax
import jax.numpy as jnp
from jax import lax
from jax.experimental import pallas as pl
from jax.experimental.pallas import tpu as pltpu


def make_pos_encoding(d_model: int, max_len: int, dtype=jnp.float32):
    """Sinusoidal table, identical math to the PyTorch __init__.

    NOTE: the reference module uses log(100000.0) (not the canonical 10000.0);
    we match the module, not the textbook.
    """
    assert d_model % 2 == 0, "PositionalEncoding requires an even d_model"
    positions = jnp.arange(max_len, dtype=jnp.float32)[:, None]              # (L, 1)
    division_term = jnp.exp(
        jnp.arange(0, d_model, 2, dtype=jnp.float32) * (-math.log(100000.0) / d_model)
    )                                                                        # (D/2,)
    pe = jnp.zeros((max_len, d_model), dtype=jnp.float32)
    pe = pe.at[:, 0::2].set(jnp.sin(positions * division_term))
    pe = pe.at[:, 1::2].set(jnp.cos(positions * division_term))
    return pe.astype(dtype)                                                  # (L, D)


def _srl(x, k: int):
    """Logical right shift on int32 (portable: Mosaic + interpret)."""
    return lax.shift_right_logical(x, jnp.full_like(x, k))


def _pe_add_kernel(x_ref, pe_ref, seed_ref, o_ref, *, p: float, training: bool,
                   seq_tile: int):
    x = x_ref[...]                      # (ts, B, D)
    pe = pe_ref[...]                    # (ts, D), already in x.dtype
    y = x + pe[:, None, :]              # broadcast over batch (sublane axis)

    if training and 0.0 < p < 1.0:
        # Inverted dropout (matches nn.Dropout semantics, not torch's RNG
        # stream).  Per-element keep decision from a "lowbias32" integer hash
        # of the global element index + seed: pure VPU int ops, no stateful
        # TPU PRNG (which has no CPU-interpret lowering).  All int32 math
        # wraps mod 2^32, which is exactly what the hash wants.
        keep_prob = 1.0 - p
        r = lax.broadcasted_iota(jnp.int32, y.shape, 0)
        b = lax.broadcasted_iota(jnp.int32, y.shape, 1)
        d = lax.broadcasted_iota(jnp.int32, y.shape, 2)
        ts, B, D = y.shape
        row0 = pl.program_id(0) * seq_tile
        gid = ((row0 + r) * B + b) * D + d              # global flat index
        h = gid + seed_ref[0] * jnp.int32(-1640531535)  # 0x9E3779B1 (Knuth)
        h = h ^ _srl(h, 16)
        h = h * jnp.int32(0x7FEB352D)
        h = h ^ _srl(h, 15)
        h = h * jnp.int32(-2073254261)                  # 0x846CA68B
        h = h ^ _srl(h, 16)
        thresh = min(int(keep_prob * 2147483648.0), (1 << 31) - 1)
        keep = (h & jnp.int32(0x7FFFFFFF)) < jnp.int32(thresh)
        scale = jnp.asarray(1.0 / keep_prob, dtype=y.dtype)
        y = jnp.where(keep, y * scale, jnp.zeros_like(y))
        # TODO(synk): mask depends on the tile size via program_id; it is
        # deterministic for a fixed (seed, shape, ts) but not across tilings.

    o_ref[...] = y.astype(o_ref.dtype)


def _pick_seq_tile(seq_len: int, row_bytes: int, sub: int, target_bytes: int) -> int:
    """Rows per block: largest multiple of `sub` keeping the x block <= target.

    Exact divisibility is NOT required -- the grid uses cdiv and Pallas masks
    the ragged last block -- so the choice is purely a VMEM-budget question.
    """
    rows = max(1, target_bytes // max(int(row_bytes), 1))
    if rows >= seq_len:
        return seq_len
    rows = max(sub, (rows // sub) * sub)
    return int(min(rows, seq_len))


def positional_encoding_forward(x, pos_encoding, *, p: float = 0.0,
                                training: bool = False, seed: int = 0,
                                tile_s: int | None = None,
                                block_target_bytes: int = 4 << 20,
                                donate_x: bool = False):
    """x: (S, B, D) token embeddings; pos_encoding: (max_len, D) table."""
    S, B, D = x.shape

    # nn.Dropout(p=1) zeroes everything; avoid the 1/(1-p) singularity.
    if training and p >= 1.0:
        return jnp.zeros_like(x)

    pe = pos_encoding[:S]                       # the [:size(0)] slice
    if pe.dtype != x.dtype:
        # (Callers should pre-cast the table once at init; this is a fallback.)
        pe = pe.astype(x.dtype)

    itemsize = jnp.dtype(x.dtype).itemsize
    sub = {4: 8, 2: 16, 1: 32}.get(itemsize, 8)          # dtype-aware sublane pack
    row_bytes = B * D * itemsize
    ts = tile_s if tile_s is not None else _pick_seq_tile(S, row_bytes, sub,
                                                          block_target_bytes)
    num_blocks = pl.cdiv(S, ts)

    # Explicit scoped-VMEM budget: 2x in + 2x out (double buffered) + 2x PE
    # block + margin.  Explicit so v5e's 16 MiB default doesn't bite.
    block_bytes = ts * row_bytes
    pe_block_bytes = ts * D * itemsize
    vmem_limit = int(max(16 << 20,
                         min(56 << 20, 4 * block_bytes + 2 * pe_block_bytes + (4 << 20))))

    kernel = functools.partial(_pe_add_kernel, p=float(p), training=bool(training),
                               seq_tile=int(ts))
    seed_arr = jnp.array([seed], dtype=jnp.int32)
    seed_spec = pl.BlockSpec(memory_space=pltpu.MemorySpace.SMEM)
    cparams = pltpu.CompilerParams(dimension_semantics=("parallel",),
                                   vmem_limit_bytes=vmem_limit)

    # If aliasing, the caller should also donate x at the jit boundary
    # (donate_argnums), otherwise XLA inserts a defensive copy of x.
    aliases = {0: 0} if donate_x else {}

    return pl.pallas_call(
        kernel,
        out_shape=jax.ShapeDtypeStruct((S, B, D), x.dtype),
        grid=(num_blocks,),
        in_specs=[
            pl.BlockSpec((ts, B, D), lambda i: (i, 0, 0)),   # x block (contiguous HBM)
            pl.BlockSpec((ts, D), lambda i: (i, 0)),         # PE block (tiny)
            seed_spec,
        ],
        out_specs=pl.BlockSpec((ts, B, D), lambda i: (i, 0, 0)),
        input_output_aliases=aliases,
        compiler_params=cparams,
    )(x, pe, seed_arr)


if __name__ == "__main__":
    key = jax.random.PRNGKey(0)
    k1, k2, k3 = jax.random.split(key, 3)

    # --- Config 1: small / unaligned shapes (B=2, D=32)
    d_model, max_len, seq_len, batch = 32, 16, 8, 2
    pe_table = make_pos_encoding(d_model, max_len)
    x = jax.random.normal(k1, (seq_len, batch, d_model), dtype=jnp.float32)
    ref = x + pe_table[:seq_len][:, None, :]
    out = jax.block_until_ready(
        positional_encoding_forward(x, pe_table, p=0.1, training=False))
    assert out.shape == (seq_len, batch, d_model)
    assert jnp.allclose(out, ref, atol=1e-6, rtol=1e-6)

    # --- Config 2: aligned shapes (B=8, D=128) -> fully dense blocks
    d_model2, max_len2, seq_len2, batch2 = 128, 64, 32, 8
    pe_table2 = make_pos_encoding(d_model2, max_len2)
    x2 = jax.random.normal(k2, (seq_len2, batch2, d_model2), dtype=jnp.float32)
    ref2 = x2 + pe_table2[:seq_len2][:, None, :]
    out2 = jax.block_until_ready(
        positional_encoding_forward(x2, pe_table2, p=0.1, training=False))
    assert out2.shape == (seq_len2, batch2, d_model2)
    assert jnp.allclose(out2, ref2, atol=1e-6, rtol=1e-6)

    # --- Config 3: ragged seq tiling (S=20, ts=8 -> blocks of 8, 8, 4)
    seq_len3 = 20
    x3 = jax.random.normal(k3, (seq_len3, batch2, d_model2), dtype=jnp.float32)
    ref3 = x3 + pe_table2[:seq_len3][:, None, :]
    out3 = jax.block_until_ready(
        positional_encoding_forward(x3, pe_table2, training=False, tile_s=8))
    assert jnp.allclose(out3, ref3, atol=1e-6, rtol=1e-6)

    # --- Config 4: training-mode dropout (hash-based mask), p = 0.5
    p_drop = 0.5
    out4 = jax.block_until_ready(
        positional_encoding_forward(x2, pe_table2, p=p_drop, training=True, seed=1234))
    scale = 1.0 / (1.0 - p_drop)
    kept = jnp.isclose(out4, ref2 * scale, atol=1e-5, rtol=1e-5)
    dropped = jnp.isclose(out4, 0.0, atol=1e-7)
    assert bool(jnp.all(kept | dropped))
    keep_rate = float(jnp.mean(kept.astype(jnp.float32)))
    assert 0.4 < keep_rate < 0.6   # 32768 samples at p=0.5: very loose bound

    # --- Config 5: p = 1.0 guard -> all zeros
    out5 = jax.block_until_ready(
        positional_encoding_forward(x, pe_table, p=1.0, training=True))
    assert bool(jnp.all(out5 == 0.0))

    print("KERNEL_OK")
</pallas_src>

<mosaic_0001>
module attributes {stable_mosaic.version = 11 : i64} {
  func.func @_pe_add_kernel(%arg0: i32, %arg1: memref<8x2x32xf32, #tpu.memory_space<vmem>>, %arg2: memref<8x32xf32, #tpu.memory_space<vmem>>, %arg3: memref<1xi32, #tpu.memory_space<smem>>, %arg4: memref<8x2x32xf32, #tpu.memory_space<vmem>>) attributes {dimension_semantics = [#tpu.dimension_semantics<parallel>], iteration_bounds = array<i64: 1>, scalar_prefetch = 0 : i64, scratch_operands = 0 : i64, tpu.core_type = #tpu.core_type<tc>, window_params = [{transform_indices = @transform_0, window_bounds = array<i64: 8, 2, 32>}, {transform_indices = @transform_1, window_bounds = array<i64: 8, 32>}, {transform_indices = @transform_2, window_bounds = array<i64: 1>}, {transform_indices = @transform_3, window_bounds = array<i64: 8, 2, 32>}]} {
    %c0 = arith.constant 0 : index
    %c0_0 = arith.constant 0 : index
    %c0_1 = arith.constant 0 : index
    %0 = vector.load %arg1[%c0, %c0_0, %c0_1] : memref<8x2x32xf32, #tpu.memory_space<vmem>>, vector<8x2x32xf32>
    %c0_2 = arith.constant 0 : index
    %c0_3 = arith.constant 0 : index
    %1 = vector.load %arg2[%c0_2, %c0_3] : memref<8x32xf32, #tpu.memory_space<vmem>>, vector<8x32xf32>
    %2 = vector.shape_cast %1 : vector<8x32xf32> to vector<8x1x32xf32>
    %3 = vector.broadcast %2 : vector<8x1x32xf32> to vector<8x2x32xf32>
    %4 = arith.addf %0, %3 : vector<8x2x32xf32>
    %c0_4 = arith.constant 0 : index
    %c0_5 = arith.constant 0 : index
    %c0_6 = arith.constant 0 : index
    %5 = vector.load %arg4[%c0_4, %c0_5, %c0_6] : memref<8x2x32xf32, #tpu.memory_space<vmem>>, vector<8x2x32xf32>
    tpu.vector_store %arg4[%c0_4, %c0_5, %c0_6], %4 {strides = array<i32>} : memref<8x2x32xf32, #tpu.memory_space<vmem>>, vector<8x2x32xf32>,
    return
  }
  func.func @transform_0(%arg0: i32) -> (i32, i32, i32) {
    %c0_i32 = arith.constant 0 : i32
    %c0_i32_0 = arith.constant 0 : i32
    %c0_i32_1 = arith.constant 0 : i32
    return %arg0, %c0_i32, %c0_i32_0 : i32, i32, i32
  }
  func.func @transform_1(%arg0: i32) -> (i32, i32) {
    %c0_i32 = arith.constant 0 : i32
    %c0_i32_0 = arith.constant 0 : i32
    return %arg0, %c0_i32 : i32, i32
  }
  func.func @transform_2(%arg0: i32) -> i32 {
    %c0_i32 = arith.constant 0 : i32
    %c0_i32_0 = arith.constant 0 : i32
    return %c0_i32 : i32
  }
  func.func @transform_3(%arg0: i32) -> (i32, i32, i32) {
    %c0_i32 = arith.constant 0 : i32
    %c0_i32_0 = arith.constant 0 : i32
    %c0_i32_1 = arith.constant 0 : i32
    return %arg0, %c0_i32, %c0_i32_0 : i32, i32, i32
  }
}

</mosaic_0001>

<llo_original>
// kernel: tpu_custom_call.1
$region0: #{tpu_custom_call.1}
  #allocation0 [shape = 'u32[]', space=smem, size = 0x4, offset = 0x4, fixed_abs, tag = 'smem constant byte address 0x4 - core index']
  #allocation1 [shape = 'u32[144,128]{1,0:T(1,128)}', space=vmem, size = 0x12000, scoped, tag = 'internal scratch']
  #allocation2 [shape = 's32[1]{0:T(128)S(6)}', space=smem, size = 0x200, scoped, tag = 'scoped memory for tpu_custom_call.1']
  %s0 = inlined_call_operand.hbm [shape: f32[8,2,32], index: 0, kind: input, shape index: {}]
  %s1 = inlined_call_operand.hbm [shape: f32[8,32], index: 1, kind: input, shape index: {}]
  %s2 = inlined_call_operand.<no memory space> [shape: s32[1], index: 2, kind: input, shape index: {}]
  %s3 = inlined_call_operand.hbm [shape: f32[8,2,32], index: 3, kind: output, shape index: {}]
  %s4 = sld [smem:[#allocation0]]
  $region30: #{tpu_custom_call.1} parent=0
    _
  %s6 = ssub.s32 1, %s4
  %s7 = scalar_select 0, %s6, %s4
  %8 = sst [smem:[#allocation2]] %s2
  $region1: #{tpu_custom_call.1} parent=0
    #allocation3 [shape = 'u8[8192]{0}', space=vmem, size = 0x2000, scoped, tag = 'input window, operand 0, single buffered']
    #allocation4 [shape = 's32[1]{0}', space=sflag, size = 0x4, scoped, tag = 'scoped memory for tpu_custom_call.1']
    #allocation5 [shape = 's32[1]{0}', space=sflag, size = 0x4, scoped, tag = 'scoped memory for tpu_custom_call.1']
    #allocation6 [shape = 'u8[4096]{0}', space=vmem, size = 0x1000, scoped, tag = 'input window, operand 1, single buffered']
    #allocation7 [shape = 's32[1]{0}', space=sflag, size = 0x4, scoped, tag = 'scoped memory for tpu_custom_call.1']
    #allocation8 [shape = 'u8[8192]{0}', space=vmem, size = 0x2000, scoped, tag = 'output window, operand 0, single buffered']
    %9 = vsyncpa [#allocation4], 0
    %10 = vsyncpa [#allocation7], 0
    %11 = vsyncpa [#allocation5], 0
    // Predicated region
    $region2: #{tpu_custom_call.1} parent=1 // pred_check
      _
    $region3: #{tpu_custom_call.1} parent=1 // pred_check_branch
      %13 = sbr.rel (0) target = $region5
    $region4: #{tpu_custom_call.1} parent=1 // pred_region
      %s15 = ssub.s32 256, 256
      %16 = vsyncadd [#allocation4], %s15
      %s17 = sshll.u32 [#allocation3], 4
      %s18 = int_to_ptr.vmem [resolvable:$true] %s17
      %23 = dma.hbm_to_vmem [thread:$0]  %s0, 256, %s18, [#allocation4], 32, 32, 2
    $region5: #{tpu_custom_call.1} parent=1 // pred_fallthru
      _
    // Predicated region
    $region6: #{tpu_custom_call.1} parent=1 // pred_check
      _
    $region7: #{tpu_custom_call.1} parent=1 // pred_check_branch
      %25 = sbr.rel (0) target = $region9
    $region8: #{tpu_custom_call.1} parent=1 // pred_region
      %s27 = ssub.s32 128, 128
      %28 = vsyncadd [#allocation7], %s27
      %s30 = sshll.u32 [#allocation6], 4
      %s31 = int_to_ptr.vmem [resolvable:$true] %s30
      %33 = dma.hbm_to_vmem [thread:$0]  %s1, 128, %s31, [#allocation7]
    $region9: #{tpu_custom_call.1} parent=1 // pred_fallthru
      _
    // Predicated region
    $region10: #{tpu_custom_call.1} parent=1 // pred_check
      _
    $region11: #{tpu_custom_call.1} parent=1 // pred_check_branch
      %35 = sbr.rel (0) target = $region13
    $region12: #{tpu_custom_call.1} parent=1 // pred_region
      _
    $region13: #{tpu_custom_call.1} parent=1 // pred_fallthru
      _
    // Predicated region
    $region14: #{tpu_custom_call.1} parent=1 // pred_check
      _
    $region15: #{tpu_custom_call.1} parent=1 // pred_check_branch
      %37 = sbr.rel (0) target = $region17
    $region16: #{tpu_custom_call.1} parent=1 // pred_region
      %38 = dma.done [#allocation4], 256
    $region17: #{tpu_custom_call.1} parent=1 // pred_fallthru
      _
    // Predicated region
    $region18: #{tpu_custom_call.1} parent=1 // pred_check
      _
    $region19: #{tpu_custom_call.1} parent=1 // pred_check_branch
      %40 = sbr.rel (0) target = $region21
    $region20: #{tpu_custom_call.1} parent=1 // pred_region
      %41 = dma.done [#allocation7], 128
    $region21: #{tpu_custom_call.1} parent=1 // pred_fallthru
      _
    %v42 = vld [vmem:[#allocation3] sm:$0x3]
    %v43 = vld [vmem:[#allocation3 + $0x2] sm:$0x3]
    %v44 = vld [vmem:[#allocation3 + $0x4] sm:$0x3]
    %v45 = vld [vmem:[#allocation3 + $0x6] sm:$0x3]
    %v46 = vld [vmem:[#allocation3 + $0x8] sm:$0x3]
    %v47 = vld [vmem:[#allocation3 + $0xa] sm:$0x3]
    %v48 = vld [vmem:[#allocation3 + $0xc] sm:$0x3]
    %v49 = vld [vmem:[#allocation3 + $0xe] sm:$0x3]
    %v50 = vld [vmem:[#allocation6] sm:$0xff]
    %v52 = vcombine.high %v50, %v50
    %v54 = vunpack.c.l.s4 1966171168
    %v55 = vunpack.c.0.s8 %v54
    %v56 = vlaneseq
    %v57 = vshrl.u32 %v56, 7
    %v58 = vsub.s32 %v55, %v57
    %v59 = vrot.slane %v50, %v58
    %v61 = vunpack.c.l.s4 1966171168
    %v62 = vunpack.c.0.s8 %v61
    %v63 = vlaneseq
    %v64 = vshrl.u32 %v63, 7
    %v65 = vsub.s32 %v62, %v64
    %v66 = vrot.slane %v52, %v65
    %v67 = vcombine.high %v59, %v59
    %v68 = vcombine.high %v66, %v66
    %v70 = vunpack.c.l.s4 1966171168
    %v71 = vunpack.c.0.s8 %v70
    %v72 = vlaneseq
    %v73 = vshrl.u32 %v72, 7
    %v74 = vsub.s32 %v71, %v73
    %v75 = vrot.slane %v59, %v74
    %v77 = vunpack.c.l.s4 1966171168
    %v78 = vunpack.c.0.s8 %v77
    %v79 = vlaneseq
    %v80 = vshrl.u32 %v79, 7
    %v81 = vsub.s32 %v78, %v80
    %v82 = vrot.slane %v66, %v81
    %v84 = vunpack.c.l.s4 1966171168
    %v85 = vunpack.c.0.s8 %v84
    %v86 = vlaneseq
    %v87 = vshrl.u32 %v86, 7
    %v88 = vsub.s32 %v85, %v87
    %v89 = vrot.slane %v67, %v88
    %v91 = vunpack.c.l.s4 1966171168
    %v92 = vunpack.c.0.s8 %v91
    %v93 = vlaneseq
    %v94 = vshrl.u32 %v93, 7
    %v95 = vsub.s32 %v92, %v94
    %v96 = vrot.slane %v68, %v95
    %v97 = vcombine.high %v75, %v75
    %v98 = vcombine.high %v82, %v82
    %v99 = vcombine.high %v89, %v89
    %v100 = vcombine.high %v96, %v96
    %v101 = vlaneseq
    %v102 = vshrl.u32 %v101, 7
    %v103 = vsub.s32 0, %v102
    %v104 = vrot.slane %v75, %v103
    %v105 = vlaneseq
    %v106 = vshrl.u32 %v105, 7
    %v107 = vsub.s32 0, %v106
    %v108 = vrot.slane %v89, %v107
    %v109 = vlaneseq
    %v110 = vshrl.u32 %v109, 7
    %v111 = vsub.s32 0, %v110
    %v112 = vrot.slane %v97, %v111
    %v113 = vlaneseq
    %v114 = vshrl.u32 %v113, 7
    %v115 = vsub.s32 0, %v114
    %v116 = vrot.slane %v99, %v115
    %v117 = vlaneseq
    %v118 = vshrl.u32 %v117, 7
    %v119 = vsub.s32 0, %v118
    %v120 = vrot.slane %v82, %v119
    %v121 = vlaneseq
    %v122 = vshrl.u32 %v121, 7
    %v123 = vsub.s32 0, %v122
    %v124 = vrot.slane %v96, %v123
    %v125 = vlaneseq
    %v126 = vshrl.u32 %v125, 7
    %v127 = vsub.s32 0, %v126
    %v128 = vrot.slane %v98, %v127
    %v129 = vlaneseq
    %v130 = vshrl.u32 %v129, 7
    %v131 = vsub.s32 0, %v130
    %v132 = vrot.slane %v100, %v131
    %v141 = vadd.f32 %v42, %v104
    %v142 = vadd.f32 %v43, %v108
    %v143 = vadd.f32 %v44, %v112
    %v144 = vadd.f32 %v45, %v116
    %v145 = vadd.f32 %v46, %v120
    %v146 = vadd.f32 %v47, %v124
    %v147 = vadd.f32 %v48, %v128
    %v148 = vadd.f32 %v49, %v132
    %vm149 = vcmask 254976
    %150 = vst.msk [vmem:[#allocation8] sm:$0x3] %vm149, %v141
    %151 = vst.msk [vmem:[#allocation8 + $0x2] sm:$0x3] %vm149, %v142
    %152 = vst.msk [vmem:[#allocation8 + $0x4] sm:$0x3] %vm149, %v143
    %153 = vst.msk [vmem:[#allocation8 + $0x6] sm:$0x3] %vm149, %v144
    %154 = vst.msk [vmem:[#allocation8 + $0x8] sm:$0x3] %vm149, %v145
    %155 = vst.msk [vmem:[#allocation8 + $0xa] sm:$0x3] %vm149, %v146
    %156 = vst.msk [vmem:[#allocation8 + $0xc] sm:$0x3] %vm149, %v147
    %157 = vst.msk [vmem:[#allocation8 + $0xe] sm:$0x3] %vm149, %v148
    // Predicated region
    $region22: #{tpu_custom_call.1} parent=1 // pred_check
      _
    $region23: #{tpu_custom_call.1} parent=1 // pred_check_branch
      %159 = sbr.rel (0) target = $region25
    $region24: #{tpu_custom_call.1} parent=1 // pred_region
      %s161 = ssub.s32 256, 256
      %162 = vsyncadd [#allocation5], %s161
      %s163 = sshll.u32 [#allocation8], 4
      %s164 = int_to_ptr.vmem [resolvable:$true] %s163
      %169 = dma.vmem_to_hbm [thread:$0]  %s164, 256, %s3, [#allocation5], 32, 32, 2
    $region25: #{tpu_custom_call.1} parent=1 // pred_fallthru
      _
    // Predicated region
    $region26: #{tpu_custom_call.1} parent=1 // pred_check
      _
    $region27: #{tpu_custom_call.1} parent=1 // pred_check_branch
      %171 = sbr.rel (0) target = $region29
    $region28: #{tpu_custom_call.1} parent=1 // pred_region
      %172 = dma.done [#allocation5], 256
    $region29: #{tpu_custom_call.1} parent=1 // pred_fallthru
      _
    %173 = vsyncpa [#allocation4], 1
    %174 = vsyncpa [#allocation7], 1
    %175 = vsyncpa [#allocation5], 1

</llo_original>
